<compile_context>
chip_gen: v7x
topology: tpu7x:2x2x1
jax: 0.10.0
libtpu: 0.0.40
codegen_flags: <defaults>
</compile_context>

<pallas_src>
import functools

import jax
import jax.numpy as jnp
from jax.experimental import pallas as pl
from jax.experimental.pallas import tpu as pltpu


def _round_up(x: int, m: int) -> int:
    return (x + m - 1) // m * m


def cnn_kernel(x_ref, w_ref, b_ref, o_ref, *, n_time: int, c_in: int, k_w: int):
    """Fused Conv1d + bias + ReLU + max-over-time for one batch tile of words.

    x_ref: (B_tile, L*C)  words, time-major / channel-minor flattened (bf16)
    w_ref: (K*C, O)       conv weight, row j = k*C + c (bf16), VMEM-resident
    b_ref: (1, O)         conv bias (f32), VMEM-resident
    o_ref: (B_tile, O)    pooled output (f32)
    """
    kc = k_w * c_in
    w = w_ref[...]                      # hoisted: one VMEM load per grid step

    # Running max over valid time steps.  Output step t consumes the contiguous
    # 80-lane window [t*C, t*C + K*C) of the flattened word -> one MXU dot with
    # M = B_tile, K = 80, N = 32.  The per-step VPU maximum hides under the
    # next dot.  n_time is small and static (17) -> fully unrolled for LLO
    # scheduler visibility.
    acc = None
    for t in range(n_time):
        lhs = x_ref[:, t * c_in : t * c_in + kc]            # static lane window
        y = jnp.dot(lhs, w, preferred_element_type=jnp.float32)
        acc = y if acc is None else jnp.maximum(acc, y)

    # bias-add and ReLU commute with max-over-time -> do them once at the end.
    o_ref[...] = jnp.maximum(acc + b_ref[...], 0.0).astype(o_ref.dtype)


def cnn_forward(x_ncw, weight_ock, bias_o, *, b_tile_max: int = 1024,
                matmul_dtype=jnp.bfloat16):
    """Wrapper. x_ncw: (B, C, L) like PyTorch NCW Conv1d input.

    Returns (B, O) f32, matching Conv1d(k) + ReLU + MaxPool1d(L-k+1) + squeeze.
    """
    B, C, L = x_ncw.shape
    O, C2, K = weight_ock.shape
    assert C2 == C, (C2, C)
    L_out = L - K + 1
    assert L_out >= 1, (L, K)
    KC = K * C
    LC = L * C

    # ---- minimal layout plumbing (no im2col, no channel/time padding) -------
    # Cast to bf16 BEFORE the transpose so the layout pass is half-width.
    # time-major / channel-minor flatten: x_flat[b, t*C + c] = x[b, c, t].
    x_flat = jnp.transpose(x_ncw.astype(matmul_dtype), (0, 2, 1)).reshape(B, LC)

    # Balanced batch tiling: >= 2 grid steps (v7x megacore sharding), tiles of
    # equal size, 16-row aligned (bf16 sublane tile) since B is the
    # second-to-last block dim.
    n_tiles = max(2, pl.cdiv(B, b_tile_max))
    B_tile = _round_up(pl.cdiv(B, n_tiles), 16)
    B_pad = B_tile * n_tiles
    x_flat = jnp.pad(x_flat, ((0, B_pad - B), (0, 0)))

    # Weight rows indexed j = k*C + c to match the flattened x windows.
    w2d = jnp.transpose(weight_ock, (2, 1, 0)).reshape(KC, O).astype(matmul_dtype)
    b2d = bias_o.astype(jnp.float32).reshape(1, O)

    kernel = functools.partial(cnn_kernel, n_time=L_out, c_in=C, k_w=K)

    cost = pl.CostEstimate(
        flops=2 * B * L_out * KC * O,
        transcendentals=0,
        bytes_accessed=(x_flat.size * x_flat.dtype.itemsize
                        + w2d.size * w2d.dtype.itemsize
                        + b2d.size * b2d.dtype.itemsize
                        + B_pad * O * 4),
    )

    out = pl.pallas_call(
        kernel,
        out_shape=jax.ShapeDtypeStruct((B_pad, O), jnp.float32),
        grid_spec=pltpu.PrefetchScalarGridSpec(
            num_scalar_prefetch=0,
            grid=(n_tiles,),
            in_specs=[
                # Batch-tiled, auto double-buffered flattened words.
                # Last dim = full array dim (L*C), no 128 padding in HBM.
                pl.BlockSpec((B_tile, LC), lambda i: (i, 0)),
                # Weight / bias stay VMEM-resident across all grid steps.
                pl.BlockSpec((KC, O), lambda i: (0, 0)),
                pl.BlockSpec((1, O), lambda i: (0, 0)),
            ],
            out_specs=pl.BlockSpec((B_tile, O), lambda i: (i, 0)),
        ),
        compiler_params=pltpu.CompilerParams(
            dimension_semantics=("parallel",),        # megacore-shardable batch
            vmem_limit_bytes=32 * 1024 * 1024,        # working set ~1-2 MiB; explicit budget
        ),
        cost_estimate=cost,
    )(x_flat, w2d, b2d)

    return out[:B]


def cnn_reference(x_ncw, weight_ock, bias_o):
    """Plain-JAX (f32) reference of the PyTorch forward."""
    B, C, L = x_ncw.shape
    O, _, K = weight_ock.shape
    L_out = L - K + 1
    cols = jnp.stack([x_ncw[:, :, k:k + L_out] for k in range(K)], axis=-1)  # (B, C, L_out, K)
    conv = jnp.einsum('bclk,ock->bol', cols, weight_ock) + bias_o[None, :, None]
    return jnp.max(jax.nn.relu(conv), axis=-1)  # (B, O)


if __name__ == "__main__":
    # Small shapes consistent with the module.
    B = 8                 # batch (number of words)
    char_embed_dim = 16   # C  (Conv1d in_channels)
    word_embed_dim = 32   # O  (Conv1d out_channels)
    max_word_length = 21  # L
    kernel_size = 5       # K

    key = jax.random.PRNGKey(0)
    kx, kw, kb = jax.random.split(key, 3)

    # Deterministic synthetic parameters (PyTorch Conv1d weight layout: (O, C, K)).
    x = jax.random.normal(kx, (B, char_embed_dim, max_word_length), dtype=jnp.float32)
    fan_in = char_embed_dim * kernel_size
    bound = 1.0 / jnp.sqrt(fan_in)
    weight = jax.random.uniform(kw, (word_embed_dim, char_embed_dim, kernel_size),
                                minval=-bound, maxval=bound, dtype=jnp.float32)
    bias = jax.random.uniform(kb, (word_embed_dim,),
                              minval=-bound, maxval=bound, dtype=jnp.float32)

    out = cnn_forward(x, weight, bias)
    out = jax.block_until_ready(out)

    ref = cnn_reference(x, weight, bias)
    assert out.shape == (B, word_embed_dim), out.shape
    # bf16 matmul operands with f32 accumulation -> loose-ish tolerance vs f32 ref.
    assert jnp.allclose(out, ref, atol=2e-2, rtol=2e-2), float(jnp.max(jnp.abs(out - ref)))

    print("KERNEL_OK")
</pallas_src>

<mosaic_0001>
module attributes {stable_mosaic.version = 11 : i64} {
  func.func @cnn_kernel(%arg0: i32, %arg1: memref<16x336xbf16, #tpu.memory_space<vmem>>, %arg2: memref<80x32xbf16, #tpu.memory_space<vmem>>, %arg3: memref<1x32xf32, #tpu.memory_space<vmem>>, %arg4: memref<16x32xf32, #tpu.memory_space<vmem>>) attributes {dimension_semantics = [#tpu.dimension_semantics<parallel>], iteration_bounds = array<i64: 2>, scalar_prefetch = 0 : i64, scratch_operands = 0 : i64, tpu.core_type = #tpu.core_type<tc>, window_params = [{transform_indices = @transform_0, window_bounds = array<i64: 16, 336>}, {pipeline_mode = #tpu.pipeline_mode<synchronous>, transform_indices = @transform_1, window_bounds = array<i64: 80, 32>}, {pipeline_mode = #tpu.pipeline_mode<synchronous>, transform_indices = @transform_2, window_bounds = array<i64: 1, 32>}, {transform_indices = @transform_3, window_bounds = array<i64: 16, 32>}]} {
    %c0 = arith.constant 0 : index
    %c0_0 = arith.constant 0 : index
    %0 = vector.load %arg2[%c0, %c0_0] : memref<80x32xbf16, #tpu.memory_space<vmem>>, vector<80x32xbf16>
    %c0_1 = arith.constant 0 : index
    %c0_2 = arith.constant 0 : index
    %1 = vector.load %arg1[%c0_1, %c0_2] : memref<16x336xbf16, #tpu.memory_space<vmem>>, vector<16x80xbf16>
    %cst = arith.constant dense<0.000000e+00> : vector<16x32xf32>
    %2 = tpu.matmul %1, %0, %cst {dimension_numbers = #tpu.dot_dimension_numbers<[1], [0], [0], [1], [0, 0, 1, 1], [], []>} : vector<16x80xbf16>, vector<80x32xbf16>, vector<16x32xf32> -> vector<16x32xf32>
    %c0_3 = arith.constant 0 : index
    %c16 = arith.constant 16 : index
    %3 = vector.load %arg1[%c0_3, %c16] : memref<16x336xbf16, #tpu.memory_space<vmem>>, vector<16x80xbf16>
    %cst_4 = arith.constant dense<0.000000e+00> : vector<16x32xf32>
    %4 = tpu.matmul %3, %0, %cst_4 {dimension_numbers = #tpu.dot_dimension_numbers<[1], [0], [0], [1], [0, 0, 1, 1], [], []>} : vector<16x80xbf16>, vector<80x32xbf16>, vector<16x32xf32> -> vector<16x32xf32>
    %5 = arith.maximumf %2, %4 : vector<16x32xf32>
    %c0_5 = arith.constant 0 : index
    %c32 = arith.constant 32 : index
    %6 = vector.load %arg1[%c0_5, %c32] : memref<16x336xbf16, #tpu.memory_space<vmem>>, vector<16x80xbf16>
    %cst_6 = arith.constant dense<0.000000e+00> : vector<16x32xf32>
    %7 = tpu.matmul %6, %0, %cst_6 {dimension_numbers = #tpu.dot_dimension_numbers<[1], [0], [0], [1], [0, 0, 1, 1], [], []>} : vector<16x80xbf16>, vector<80x32xbf16>, vector<16x32xf32> -> vector<16x32xf32>
    %8 = arith.maximumf %5, %7 : vector<16x32xf32>
    %c0_7 = arith.constant 0 : index
    %c48 = arith.constant 48 : index
    %9 = vector.load %arg1[%c0_7, %c48] : memref<16x336xbf16, #tpu.memory_space<vmem>>, vector<16x80xbf16>
    %cst_8 = arith.constant dense<0.000000e+00> : vector<16x32xf32>
    %10 = tpu.matmul %9, %0, %cst_8 {dimension_numbers = #tpu.dot_dimension_numbers<[1], [0], [0], [1], [0, 0, 1, 1], [], []>} : vector<16x80xbf16>, vector<80x32xbf16>, vector<16x32xf32> -> vector<16x32xf32>
    %11 = arith.maximumf %8, %10 : vector<16x32xf32>
    %c0_9 = arith.constant 0 : index
    %c64 = arith.constant 64 : index
    %12 = vector.load %arg1[%c0_9, %c64] : memref<16x336xbf16, #tpu.memory_space<vmem>>, vector<16x80xbf16>
    %cst_10 = arith.constant dense<0.000000e+00> : vector<16x32xf32>
    %13 = tpu.matmul %12, %0, %cst_10 {dimension_numbers = #tpu.dot_dimension_numbers<[1], [0], [0], [1], [0, 0, 1, 1], [], []>} : vector<16x80xbf16>, vector<80x32xbf16>, vector<16x32xf32> -> vector<16x32xf32>
    %14 = arith.maximumf %11, %13 : vector<16x32xf32>
    %c0_11 = arith.constant 0 : index
    %c80 = arith.constant 80 : index
    %15 = vector.load %arg1[%c0_11, %c80] : memref<16x336xbf16, #tpu.memory_space<vmem>>, vector<16x80xbf16>
    %cst_12 = arith.constant dense<0.000000e+00> : vector<16x32xf32>
    %16 = tpu.matmul %15, %0, %cst_12 {dimension_numbers = #tpu.dot_dimension_numbers<[1], [0], [0], [1], [0, 0, 1, 1], [], []>} : vector<16x80xbf16>, vector<80x32xbf16>, vector<16x32xf32> -> vector<16x32xf32>
    %17 = arith.maximumf %14, %16 : vector<16x32xf32>
    %c0_13 = arith.constant 0 : index
    %c96 = arith.constant 96 : index
    %18 = vector.load %arg1[%c0_13, %c96] : memref<16x336xbf16, #tpu.memory_space<vmem>>, vector<16x80xbf16>
    %cst_14 = arith.constant dense<0.000000e+00> : vector<16x32xf32>
    %19 = tpu.matmul %18, %0, %cst_14 {dimension_numbers = #tpu.dot_dimension_numbers<[1], [0], [0], [1], [0, 0, 1, 1], [], []>} : vector<16x80xbf16>, vector<80x32xbf16>, vector<16x32xf32> -> vector<16x32xf32>
    %20 = arith.maximumf %17, %19 : vector<16x32xf32>
    %c0_15 = arith.constant 0 : index
    %c112 = arith.constant 112 : index
    %21 = vector.load %arg1[%c0_15, %c112] : memref<16x336xbf16, #tpu.memory_space<vmem>>, vector<16x80xbf16>
    %cst_16 = arith.constant dense<0.000000e+00> : vector<16x32xf32>
    %22 = tpu.matmul %21, %0, %cst_16 {dimension_numbers = #tpu.dot_dimension_numbers<[1], [0], [0], [1], [0, 0, 1, 1], [], []>} : vector<16x80xbf16>, vector<80x32xbf16>, vector<16x32xf32> -> vector<16x32xf32>
    %23 = arith.maximumf %20, %22 : vector<16x32xf32>
    %c0_17 = arith.constant 0 : index
    %c128 = arith.constant 128 : index
    %24 = vector.load %arg1[%c0_17, %c128] : memref<16x336xbf16, #tpu.memory_space<vmem>>, vector<16x80xbf16>
    %cst_18 = arith.constant dense<0.000000e+00> : vector<16x32xf32>
    %25 = tpu.matmul %24, %0, %cst_18 {dimension_numbers = #tpu.dot_dimension_numbers<[1], [0], [0], [1], [0, 0, 1, 1], [], []>} : vector<16x80xbf16>, vector<80x32xbf16>, vector<16x32xf32> -> vector<16x32xf32>
    %26 = arith.maximumf %23, %25 : vector<16x32xf32>
    %c0_19 = arith.constant 0 : index
    %c144 = arith.constant 144 : index
    %27 = vector.load %arg1[%c0_19, %c144] : memref<16x336xbf16, #tpu.memory_space<vmem>>, vector<16x80xbf16>
    %cst_20 = arith.constant dense<0.000000e+00> : vector<16x32xf32>
    %28 = tpu.matmul %27, %0, %cst_20 {dimension_numbers = #tpu.dot_dimension_numbers<[1], [0], [0], [1], [0, 0, 1, 1], [], []>} : vector<16x80xbf16>, vector<80x32xbf16>, vector<16x32xf32> -> vector<16x32xf32>
    %29 = arith.maximumf %26, %28 : vector<16x32xf32>
    %c0_21 = arith.constant 0 : index
    %c160 = arith.constant 160 : index
    %30 = vector.load %arg1[%c0_21, %c160] : memref<16x336xbf16, #tpu.memory_space<vmem>>, vector<16x80xbf16>
    %cst_22 = arith.constant dense<0.000000e+00> : vector<16x32xf32>
    %31 = tpu.matmul %30, %0, %cst_22 {dimension_numbers = #tpu.dot_dimension_numbers<[1], [0], [0], [1], [0, 0, 1, 1], [], []>} : vector<16x80xbf16>, vector<80x32xbf16>, vector<16x32xf32> -> vector<16x32xf32>
    %32 = arith.maximumf %29, %31 : vector<16x32xf32>
    %c0_23 = arith.constant 0 : index
    %c176 = arith.constant 176 : index
    %33 = vector.load %arg1[%c0_23, %c176] : memref<16x336xbf16, #tpu.memory_space<vmem>>, vector<16x80xbf16>
    %cst_24 = arith.constant dense<0.000000e+00> : vector<16x32xf32>
    %34 = tpu.matmul %33, %0, %cst_24 {dimension_numbers = #tpu.dot_dimension_numbers<[1], [0], [0], [1], [0, 0, 1, 1], [], []>} : vector<16x80xbf16>, vector<80x32xbf16>, vector<16x32xf32> -> vector<16x32xf32>
    %35 = arith.maximumf %32, %34 : vector<16x32xf32>
    %c0_25 = arith.constant 0 : index
    %c192 = arith.constant 192 : index
    %36 = vector.load %arg1[%c0_25, %c192] : memref<16x336xbf16, #tpu.memory_space<vmem>>, vector<16x80xbf16>
    %cst_26 = arith.constant dense<0.000000e+00> : vector<16x32xf32>
    %37 = tpu.matmul %36, %0, %cst_26 {dimension_numbers = #tpu.dot_dimension_numbers<[1], [0], [0], [1], [0, 0, 1, 1], [], []>} : vector<16x80xbf16>, vector<80x32xbf16>, vector<16x32xf32> -> vector<16x32xf32>
    %38 = arith.maximumf %35, %37 : vector<16x32xf32>
    %c0_27 = arith.constant 0 : index
    %c208 = arith.constant 208 : index
    %39 = vector.load %arg1[%c0_27, %c208] : memref<16x336xbf16, #tpu.memory_space<vmem>>, vector<16x80xbf16>
    %cst_28 = arith.constant dense<0.000000e+00> : vector<16x32xf32>
    %40 = tpu.matmul %39, %0, %cst_28 {dimension_numbers = #tpu.dot_dimension_numbers<[1], [0], [0], [1], [0, 0, 1, 1], [], []>} : vector<16x80xbf16>, vector<80x32xbf16>, vector<16x32xf32> -> vector<16x32xf32>
    %41 = arith.maximumf %38, %40 : vector<16x32xf32>
    %c0_29 = arith.constant 0 : index
    %c224 = arith.constant 224 : index
    %42 = vector.load %arg1[%c0_29, %c224] : memref<16x336xbf16, #tpu.memory_space<vmem>>, vector<16x80xbf16>
    %cst_30 = arith.constant dense<0.000000e+00> : vector<16x32xf32>
    %43 = tpu.matmul %42, %0, %cst_30 {dimension_numbers = #tpu.dot_dimension_numbers<[1], [0], [0], [1], [0, 0, 1, 1], [], []>} : vector<16x80xbf16>, vector<80x32xbf16>, vector<16x32xf32> -> vector<16x32xf32>
    %44 = arith.maximumf %41, %43 : vector<16x32xf32>
    %c0_31 = arith.constant 0 : index
    %c240 = arith.constant 240 : index
    %45 = vector.load %arg1[%c0_31, %c240] : memref<16x336xbf16, #tpu.memory_space<vmem>>, vector<16x80xbf16>
    %cst_32 = arith.constant dense<0.000000e+00> : vector<16x32xf32>
    %46 = tpu.matmul %45, %0, %cst_32 {dimension_numbers = #tpu.dot_dimension_numbers<[1], [0], [0], [1], [0, 0, 1, 1], [], []>} : vector<16x80xbf16>, vector<80x32xbf16>, vector<16x32xf32> -> vector<16x32xf32>
    %47 = arith.maximumf %44, %46 : vector<16x32xf32>
    %c0_33 = arith.constant 0 : index
    %c256 = arith.constant 256 : index
    %48 = vector.load %arg1[%c0_33, %c256] : memref<16x336xbf16, #tpu.memory_space<vmem>>, vector<16x80xbf16>
    %cst_34 = arith.constant dense<0.000000e+00> : vector<16x32xf32>
    %49 = tpu.matmul %48, %0, %cst_34 {dimension_numbers = #tpu.dot_dimension_numbers<[1], [0], [0], [1], [0, 0, 1, 1], [], []>} : vector<16x80xbf16>, vector<80x32xbf16>, vector<16x32xf32> -> vector<16x32xf32>
    %50 = arith.maximumf %47, %49 : vector<16x32xf32>
    %c0_35 = arith.constant 0 : index
    %c0_36 = arith.constant 0 : index
    %51 = vector.load %arg3[%c0_35, %c0_36] : memref<1x32xf32, #tpu.memory_space<vmem>>, vector<1x32xf32>
    %52 = vector.broadcast %51 : vector<1x32xf32> to vector<16x32xf32>
    %53 = arith.addf %50, %52 : vector<16x32xf32>
    %cst_37 = arith.constant 0.000000e+00 : f32
    %54 = vector.broadcast %cst_37 : f32 to vector<16x32xf32>
    %55 = arith.maximumf %53, %54 : vector<16x32xf32>
    %c0_38 = arith.constant 0 : index
    %c0_39 = arith.constant 0 : index
    %56 = vector.load %arg4[%c0_38, %c0_39] : memref<16x32xf32, #tpu.memory_space<vmem>>, vector<16x32xf32>
    tpu.vector_store %arg4[%c0_38, %c0_39], %55 {strides = array<i32>} : memref<16x32xf32, #tpu.memory_space<vmem>>, vector<16x32xf32>,
    return
  }
  func.func @transform_0(%arg0: i32) -> (i32, i32) {
    %c0_i32 = arith.constant 0 : i32
    %c0_i32_0 = arith.constant 0 : i32
    return %arg0, %c0_i32 : i32, i32
  }
  func.func @transform_1(%arg0: i32) -> (i32, i32) {
    %c0_i32 = arith.constant 0 : i32
    %c0_i32_0 = arith.constant 0 : i32
    %c0_i32_1 = arith.constant 0 : i32
    return %c0_i32, %c0_i32_0 : i32, i32
  }
  func.func @transform_2(%arg0: i32) -> (i32, i32) {
    %c0_i32 = arith.constant 0 : i32
    %c0_i32_0 = arith.constant 0 : i32
    %c0_i32_1 = arith.constant 0 : i32
    return %c0_i32, %c0_i32_0 : i32, i32
  }
  func.func @transform_3(%arg0: i32) -> (i32, i32) {
    %c0_i32 = arith.constant 0 : i32
    %c0_i32_0 = arith.constant 0 : i32
    return %arg0, %c0_i32 : i32, i32
  }
}

</mosaic_0001>

<llo_original>
// kernel: tpu_custom_call.1
$region0: #{tpu_custom_call.1}
  #allocation0 [shape = 'u32[]', space=smem, size = 0x4, offset = 0x4, fixed_abs, tag = 'smem constant byte address 0x4 - core index']
  #allocation1 [shape = 'u32[144,128]{1,0:T(1,128)}', space=vmem, size = 0x12000, scoped, tag = 'internal scratch']
  %s0 = inlined_call_operand.vmem [shape: bf16[32,336], index: 0, kind: input, shape index: {}]
  %s1 = inlined_call_operand.vmem [shape: bf16[80,32], index: 1, kind: input, shape index: {}]
  %s2 = inlined_call_operand.vmem [shape: f32[1,32], index: 2, kind: input, shape index: {}]
  %s3 = inlined_call_operand.hbm [shape: f32[32,32], index: 3, kind: output, shape index: {}]
  %s4 = sld [smem:[#allocation0]]
  $region45: #{tpu_custom_call.1} parent=0
    _
  %s6 = ssub.s32 1, %s4
  %s7 = scalar_select 0, %s6, %s4
  $region1: #{tpu_custom_call.1} parent=0
    #allocation2 [shape = 'u8[16384]{0}', space=vmem, size = 0x4000, scoped, tag = 'output window, operand 0']
    #allocation3 [shape = 's32[2]{0}', space=sflag, size = 0x8, scoped, tag = 'scoped memory for tpu_custom_call.1']
    %8 = vsyncpa [#allocation3], 0
    %s9 = scalar_lea.sflag [#allocation3], 1
    %10 = vsyncpa %s9, 0
    loop: start=0, step=1, limit=4
    $region2: #{tpu_custom_call.1} parent=1 // loop_pre_header
      _
    $region3: #{tpu_custom_call.1} parent=1 // loop_header
      %s12 = sphi 0, %s16
      %p13 = scmp.ge.s32.totalorder %s12, 4
      %s22 = sphi 0, %s24
      %s25 = sphi 0, %s22
      %s26 = sphi 0, %s25
      %s42 = sphi 0, %s26
      %s46 = sphi 0, %s46
      %s48 = sphi 0, %s46
      %s49 = sphi 0, %s48
      %s63 = sphi 0, %s49
      %s67 = sphi 0, %s67
      %s69 = sphi 0, %s67
      %s70 = sphi 0, %s69
      %s84 = sphi 0, %s70
      %s90 = sphi 0, %s92
      %s93 = sphi 0, %s90
      %s94 = sphi 0, %s93
      %s110 = sphi 0, %s94
    $region4: #{tpu_custom_call.1} parent=1 // loop_header_branch
      %15 = sbr.rel (%p13) target = $region8
    $region5: #{tpu_custom_call.1} parent=1 // loop_body
      %s17 = ssub.s32 %s12, 1
      %s18 = ssub.s32 %s12, 2
      %s19 = sadd.s32 %s12, 1
      %s20 = ssub.s32 %s12, %s19
      %p21 = scmp.eq.s32.totalorder %s20, 0
      %s23 = sadd.s32 %s22, 1
      %s24 = scalar_select %p21, %s22, %s23
      %p27 = pneg %p21
      %p28 = scmp.eq.s32.totalorder %s12, 1
      %p29 = por %p27, %p28
      %p30 = scmp.ne.s32.totalorder %s22, %s25
      %p31 = scmp.eq.s32.totalorder %s12, 0
      %p32 = por %p30, %p31
      %p33 = scmp.ne.s32.totalorder %s22, %s25
      %p34 = scmp.eq.s32.totalorder %s17, 1
      %p35 = por %p33, %p34
      %p36 = scmp.ne.s32.totalorder %s25, %s26
      %p37 = scmp.eq.s32.totalorder %s17, 0
      %p38 = por %p36, %p37
      %p39 = scmp.ne.s32.totalorder %s25, %s26
      %p40 = scmp.eq.s32.totalorder %s18, 1
      %p41 = por %p39, %p40
      %p43 = scmp.ne.s32.totalorder %s26, %s42
      %p44 = scmp.eq.s32.totalorder %s18, 0
      %p45 = por %p43, %p44
      %s47 = sadd.s32 %s46, 1
      %p50 = scmp.eq.s32.totalorder %s12, 1
      %p51 = scmp.ne.s32.totalorder %s46, %s48
      %p52 = scmp.eq.s32.totalorder %s12, 0
      %p53 = por %p51, %p52
      %p54 = scmp.ne.s32.totalorder %s46, %s48
      %p55 = scmp.eq.s32.totalorder %s17, 1
      %p56 = por %p54, %p55
      %p57 = scmp.ne.s32.totalorder %s48, %s49
      %p58 = scmp.eq.s32.totalorder %s17, 0
      %p59 = por %p57, %p58
      %p60 = scmp.ne.s32.totalorder %s48, %s49
      %p61 = scmp.eq.s32.totalorder %s18, 1
      %p62 = por %p60, %p61
      %p64 = scmp.ne.s32.totalorder %s49, %s63
      %p65 = scmp.eq.s32.totalorder %s18, 0
      %p66 = por %p64, %p65
      %s68 = sadd.s32 %s67, 1
      %p71 = scmp.eq.s32.totalorder %s12, 1
      %p72 = scmp.ne.s32.totalorder %s67, %s69
      %p73 = scmp.eq.s32.totalorder %s12, 0
      %p74 = por %p72, %p73
      %p75 = scmp.ne.s32.totalorder %s67, %s69
      %p76 = scmp.eq.s32.totalorder %s17, 1
      %p77 = por %p75, %p76
      %p78 = scmp.ne.s32.totalorder %s69, %s70
      %p79 = scmp.eq.s32.totalorder %s17, 0
      %p80 = por %p78, %p79
      %p81 = scmp.ne.s32.totalorder %s69, %s70
      %p82 = scmp.eq.s32.totalorder %s18, 1
      %p83 = por %p81, %p82
      %p85 = scmp.ne.s32.totalorder %s70, %s84
      %p86 = scmp.eq.s32.totalorder %s18, 0
      %p87 = por %p85, %p86
      %s88 = ssub.s32 %s12, %s19
      %p89 = scmp.eq.s32.totalorder %s88, 0
      %s91 = sadd.s32 %s90, 1
      %s92 = scalar_select %p89, %s90, %s91
      %p95 = pneg %p89
      %p96 = scmp.eq.s32.totalorder %s12, 1
      %p97 = por %p95, %p96
      %p98 = scmp.ne.s32.totalorder %s90, %s93
      %p99 = scmp.eq.s32.totalorder %s12, 0
      %p100 = por %p98, %p99
      %p101 = scmp.ne.s32.totalorder %s90, %s93
      %p102 = scmp.eq.s32.totalorder %s17, 1
      %p103 = por %p101, %p102
      %p104 = scmp.ne.s32.totalorder %s93, %s94
      %p105 = scmp.eq.s32.totalorder %s17, 0
      %p106 = por %p104, %p105
      %p107 = scmp.ne.s32.totalorder %s93, %s94
      %p108 = scmp.eq.s32.totalorder %s18, 1
      %p109 = por %p107, %p108
      %p111 = scmp.ne.s32.totalorder %s94, %s110
      %p112 = scmp.eq.s32.totalorder %s18, 0
      %p113 = por %p111, %p112
      %p114 = scmp.le.s32.totalorder 1, %s12
      %p115 = scmp.lt.s32.totalorder %s12, 3
      %p116 = pnand %p114, %p115
      %p117 = pneg %p116
      // Predicated region
      $region9: #{tpu_custom_call.1} parent=5 // pred_check
        _
      $region10: #{tpu_custom_call.1} parent=5 // pred_check_branch
        %119 = sbr.rel (%p116) target = $region12
      $region11: #{tpu_custom_call.1} parent=5 // pred_region
        %s120 = ssub.s32 %s12, 1
        // Predicated region
        $region13: #{tpu_custom_call.1} parent=11 // pred_check
          %p121 = pneg %p59
        $region14: #{tpu_custom_call.1} parent=11 // pred_check_branch
          %123 = sbr.rel (%p121) target = $region16
        $region15: #{tpu_custom_call.1} parent=11 // pred_region
          _
        $region16: #{tpu_custom_call.1} parent=11 // pred_fallthru
          _
        // Predicated region
        $region17: #{tpu_custom_call.1} parent=11 // pred_check
          %p124 = pneg %p80
        $region18: #{tpu_custom_call.1} parent=11 // pred_check_branch
          %126 = sbr.rel (%p124) target = $region20
        $region19: #{tpu_custom_call.1} parent=11 // pred_region
          _
        $region20: #{tpu_custom_call.1} parent=11 // pred_fallthru
          _
      $region12: #{tpu_custom_call.1} parent=5 // pred_fallthru
        _
      %p127 = scmp.lt.s32.totalorder %s12, 2
      // Predicated region
      $region21: #{tpu_custom_call.1} parent=5 // pred_check
        %p128 = pneg %p127
      $region22: #{tpu_custom_call.1} parent=5 // pred_check_branch
        %130 = sbr.rel (%p128) target = $region24
      $region23: #{tpu_custom_call.1} parent=5 // pred_region
        // Predicated region
        $region25: #{tpu_custom_call.1} parent=23 // pred_check
          %p131 = pneg %p32
        $region26: #{tpu_custom_call.1} parent=23 // pred_check_branch
          %133 = sbr.rel (%p131) target = $region28
        $region27: #{tpu_custom_call.1} parent=23 // pred_region
          %s134 = smul.u32 2, %s12
          %p135 = scmp.lt.s32.totalorder %s134, 3
          %s136 = scalar_select %p135, %s134, 3
          %s137 = smul.addr %s136, 3
          %s138 = smul.addr %s137, 4
          %s139 = scalar_lea.vmem %s0, %s138
          %s140 = smul.u32 2, %s12
        $region28: #{tpu_custom_call.1} parent=23 // pred_fallthru
          _
      $region24: #{tpu_custom_call.1} parent=5 // pred_fallthru
        _
      %p141 = scmp.le.s32.totalorder 1, %s12
      %p142 = scmp.lt.s32.totalorder %s12, 3
      %p143 = pnand %p141, %p142
      %p144 = pneg %p143
      // Predicated region
      $region29: #{tpu_custom_call.1} parent=5 // pred_check
        _
      $region30: #{tpu_custom_call.1} parent=5 // pred_check_branch
        %146 = sbr.rel (%p143) target = $region32
      $region31: #{tpu_custom_call.1} parent=5 // pred_region
        %s147 = ssub.s32 %s12, 1
        %s148 = smul.u32 2, %s17
        %p149 = scmp.lt.s32.totalorder %s148, 3
        %s150 = scalar_select %p149, %s148, 3
        %s151 = smul.addr %s150, 3
        %s152 = smul.addr %s151, 4
        %s153 = scalar_lea.vmem %s0, %s152
        %p154 = pneg %p38
        %p155 = pneg %p35
        %p156 = pneg %p59
        %p157 = pneg %p56
        %p158 = pneg %p80
        %p159 = pneg %p77
        %p160 = pneg %p106
        %p161 = pneg %p103
        %s162 = sand.u32 %s93, 1
        %s163 = scalar_lea.sflag [#allocation3], %s162
        %s164 = sand.u32 %s93, 1
        %s165 = smul.addr %s164, 16
        %s166 = scalar_lea.vmem [#allocation2], %s165
        %s167 = smul.u32 2, %s17
        %p168 = scmp.lt.s32.totalorder %s167, 3
        %s169 = scalar_select %p168, %s167, 3
        %s170 = smul.addr %s169, 3
        %s171 = smul.addr %s170, 4
        %s172 = scalar_lea.vmem %s0, %s171
        %s173 = smul.u32 2, %s17
        %s174 = smul.u32 2, %s17
        %v176 = vld [vmem:[%s1] sm:$0xf]
        %v177 = vld [vmem:[%s1 + $0x4] sm:$0xf]
        %v178 = vld [vmem:[%s1 + $0x8] sm:$0xf]
        %v179 = vld [vmem:[%s1 + $0xc] sm:$0xf]
        %v180 = vld [vmem:[%s1 + $0x10] sm:$0xf]
        %v181 = vld [vmem:[%s1 + $0x14] sm:$0xf]
        %v182 = vld [vmem:[%s1 + $0x18] sm:$0xf]
        %v183 = vld [vmem:[%s1 + $0x1c] sm:$0xf]
        %v184 = vld [vmem:[%s1 + $0x20] sm:$0xf]
        %v185 = vld [vmem:[%s1 + $0x24] sm:$0xf]
        %v186 = vld [vmem:[%s172] sm:$0xf]
        %v187 = vld [vmem:[%s172 + $0xc] sm:$0xf]
        %v190 = vunpack.c.l.b16 %v186
        %v191 = vunpack.c.l.b16 %v187
        %v192 = vpack.c.b16 %v191, %v190
        %v203 = vunpack.c.l.b16 %v176
        %v204 = vunpack.c.l.b16 %v177
        %v205 = vunpack.c.l.b16 %v178
        %v206 = vunpack.c.l.b16 %v179
        %v207 = vunpack.c.l.b16 %v180
        %v208 = vunpack.c.l.b16 %v181
        %v209 = vunpack.c.l.b16 %v182
        %v210 = vunpack.c.l.b16 %v183
        %v211 = vunpack.c.l.b16 %v184
        %v212 = vunpack.c.l.b16 %v185
        %v213 = vpack.c.b16 %v204, %v203
        %v214 = vpack.c.b16 %v206, %v205
        %v215 = vpack.c.b16 %v208, %v207
        %v216 = vpack.c.b16 %v210, %v209
        %v217 = vpack.c.b16 %v212, %v211
        %vm223 = vcmask 654336
        %v225 = vsel %vm223, %v192, 0
        %227 = vmatprep.subr.bf16.mxu0 0
        %228 = vmatpush1.bf16.msra.mxu0 %v213
        %229 = vmatprep.subr.bf16.mxu0 0
        %230 = vmatpush1.bf16.msra.mxu0 %v214
        %231 = vmatprep.subr.bf16.mxu0 0
        %232 = vmatpush1.bf16.msra.mxu0 %v215
        %233 = vmatprep.subr.bf16.mxu0 0
        %234 = vmatpush1.bf16.msra.mxu0 %v216
        %235 = vmatprep.subr.bf16.mxu0 0
        %236 = vmatpush1.bf16.msra.mxu0 %v217
        %237 = vmatprep.subr.bf16.mxu0 0
        %238 = vmatpush1.bf16.msra.mxu0 0
        %239 = vmatprep.subr.bf16.mxu0 0
        %240 = vmatpush1.bf16.msra.mxu0 0
        %241 = vmatprep.subr.bf16.mxu0 0
        %242 = vmatpush1.bf16.msra.mxu0 0
        %243 = vmatprep.subr.bf16.mxu0 0
        %244 = vmatpush1.bf16.msra.mxu0 0
        %245 = vmatprep.subr.bf16.mxu0 0
        %246 = vmatpush1.bf16.msra.mxu0 0
        %247 = vmatprep.subr.bf16.mxu0 0
        %248 = vmatpush1.bf16.msra.mxu0 0
        %249 = vmatprep.subr.bf16.mxu0 0
        %250 = vmatpush1.bf16.msra.mxu0 0
        %251 = vmatprep.subr.bf16.mxu0 0
        %252 = vmatpush1.bf16.msra.mxu0 0
        %253 = vmatprep.subr.bf16.mxu0 0
        %254 = vmatpush1.bf16.msra.mxu0 0
        %255 = vmatprep.subr.bf16.mxu0 0
        %256 = vmatpush1.bf16.msra.mxu0 0
        %257 = vmatprep.subr.bf16.mxu0 0
        %258 = vmatpush1.bf16.msra.mxu0 0
        %259 = vmatprep.mubr.bf16.mxu0 0
        %260 = vmatmul.mubr.bf16.gmra.mrb[0].mxu0 %v225
        %v261 = vpop.f32.mrb[0].mxu0
        %v262 = vadd.f32 0.0, %v261
        %v263 = vpop.f32.mrb[0].mxu0
        %v264 = vpop.f32.mrb[0].mxu0
        %v265 = vadd.f32 0.0, %v264
        %v266 = vpop.f32.mrb[0].mxu0
        %267 = vdwg.mxu0
        %268 = vrot.lane.b32.xlu0 %v192, 112
        %v269 = vpop.permute.xlu0 %268
        %v271 = vsel %vm223, %v269, 0
        %273 = vmatprep.subr.bf16.mxu0 0
        %274 = vmatpush1.bf16.msra.mxu0 %v213
        %275 = vmatprep.subr.bf16.mxu0 0
        %276 = vmatpush1.bf16.msra.mxu0 %v214
        %277 = vmatprep.subr.bf16.mxu0 0
        %278 = vmatpush1.bf16.msra.mxu0 %v215
        %279 = vmatprep.subr.bf16.mxu0 0
        %280 = vmatpush1.bf16.msra.mxu0 %v216
        %281 = vmatprep.subr.bf16.mxu0 0
        %282 = vmatpush1.bf16.msra.mxu0 %v217
        %283 = vmatprep.subr.bf16.mxu0 0
        %284 = vmatpush1.bf16.msra.mxu0 0
        %285 = vmatprep.subr.bf16.mxu0 0
        %286 = vmatpush1.bf16.msra.mxu0 0
        %287 = vmatprep.subr.bf16.mxu0 0
        %288 = vmatpush1.bf16.msra.mxu0 0
        %289 = vmatprep.subr.bf16.mxu0 0
        %290 = vmatpush1.bf16.msra.mxu0 0
        %291 = vmatprep.subr.bf16.mxu0 0
        %292 = vmatpush1.bf16.msra.mxu0 0
        %293 = vmatprep.subr.bf16.mxu0 0
        %294 = vmatpush1.bf16.msra.mxu0 0
        %295 = vmatprep.subr.bf16.mxu0 0
        %296 = vmatpush1.bf16.msra.mxu0 0
        %297 = vmatprep.subr.bf16.mxu0 0
        %298 = vmatpush1.bf16.msra.mxu0 0
        %299 = vmatprep.subr.bf16.mxu0 0
        %300 = vmatpush1.bf16.msra.mxu0 0
        %301 = vmatprep.subr.bf16.mxu0 0
        %302 = vmatpush1.bf16.msra.mxu0 0
        %303 = vmatprep.subr.bf16.mxu0 0
        %304 = vmatpush1.bf16.msra.mxu0 0
        %305 = vmatprep.mubr.bf16.mxu0 0
        %306 = vmatmul.mubr.bf16.gmra.mrb[0].mxu0 %v271
        %v307 = vpop.f32.mrb[0].mxu0
        %v308 = vadd.f32 0.0, %v307
        %v309 = vpop.f32.mrb[0].mxu0
        %v310 = vpop.f32.mrb[0].mxu0
        %v311 = vadd.f32 0.0, %v310
        %v312 = vpop.f32.mrb[0].mxu0
        %313 = vdwg.mxu0
        %v314 = vmax.f32 %v262, %v308
        %v315 = vmax.f32 %v265, %v311
        %316 = vrot.lane.b32.xlu0 %v192, 96
        %v317 = vpop.permute.xlu0 %316
        %v319 = vsel %vm223, %v317, 0
        %321 = vmatprep.subr.bf16.mxu0 0
        %322 = vmatpush1.bf16.msra.mxu0 %v213
        %323 = vmatprep.subr.bf16.mxu0 0
        %324 = vmatpush1.bf16.msra.mxu0 %v214
        %325 = vmatprep.subr.bf16.mxu0 0
        %326 = vmatpush1.bf16.msra.mxu0 %v215
        %327 = vmatprep.subr.bf16.mxu0 0
        %328 = vmatpush1.bf16.msra.mxu0 %v216
        %329 = vmatprep.subr.bf16.mxu0 0
        %330 = vmatpush1.bf16.msra.mxu0 %v217
        %331 = vmatprep.subr.bf16.mxu0 0
        %332 = vmatpush1.bf16.msra.mxu0 0
        %333 = vmatprep.subr.bf16.mxu0 0
        %334 = vmatpush1.bf16.msra.mxu0 0
        %335 = vmatprep.subr.bf16.mxu0 0
        %336 = vmatpush1.bf16.msra.mxu0 0
        %337 = vmatprep.subr.bf16.mxu0 0
        %338 = vmatpush1.bf16.msra.mxu0 0
        %339 = vmatprep.subr.bf16.mxu0 0
        %340 = vmatpush1.bf16.msra.mxu0 0
        %341 = vmatprep.subr.bf16.mxu0 0
        %342 = vmatpush1.bf16.msra.mxu0 0
        %343 = vmatprep.subr.bf16.mxu0 0
        %344 = vmatpush1.bf16.msra.mxu0 0
        %345 = vmatprep.subr.bf16.mxu0 0
        %346 = vmatpush1.bf16.msra.mxu0 0
        %347 = vmatprep.subr.bf16.mxu0 0
        %348 = vmatpush1.bf16.msra.mxu0 0
        %349 = vmatprep.subr.bf16.mxu0 0
        %350 = vmatpush1.bf16.msra.mxu0 0
        %351 = vmatprep.subr.bf16.mxu0 0
        %352 = vmatpush1.bf16.msra.mxu0 0
        %353 = vmatprep.mubr.bf16.mxu0 0
        %354 = vmatmul.mubr.bf16.gmra.mrb[0].mxu0 %v319
        %v355 = vpop.f32.mrb[0].mxu0
        %v356 = vadd.f32 0.0, %v355
        %v357 = vpop.f32.mrb[0].mxu0
        %v358 = vpop.f32.mrb[0].mxu0
        %v359 = vadd.f32 0.0, %v358
        %v360 = vpop.f32.mrb[0].mxu0
        %361 = vdwg.mxu0
        %v362 = vmax.f32 %v314, %v356
        %v363 = vmax.f32 %v315, %v359
        %364 = vrot.lane.b32.xlu0 %v192, 80
        %v365 = vpop.permute.xlu0 %364
        %v367 = vsel %vm223, %v365, 0
        %369 = vmatprep.subr.bf16.mxu0 0
        %370 = vmatpush1.bf16.msra.mxu0 %v213
        %371 = vmatprep.subr.bf16.mxu0 0
        %372 = vmatpush1.bf16.msra.mxu0 %v214
        %373 = vmatprep.subr.bf16.mxu0 0
        %374 = vmatpush1.bf16.msra.mxu0 %v215
        %375 = vmatprep.subr.bf16.mxu0 0
        %376 = vmatpush1.bf16.msra.mxu0 %v216
        %377 = vmatprep.subr.bf16.mxu0 0
        %378 = vmatpush1.bf16.msra.mxu0 %v217
        %379 = vmatprep.subr.bf16.mxu0 0
        %380 = vmatpush1.bf16.msra.mxu0 0
        %381 = vmatprep.subr.bf16.mxu0 0
        %382 = vmatpush1.bf16.msra.mxu0 0
        %383 = vmatprep.subr.bf16.mxu0 0
        %384 = vmatpush1.bf16.msra.mxu0 0
        %385 = vmatprep.subr.bf16.mxu0 0
        %386 = vmatpush1.bf16.msra.mxu0 0
        %387 = vmatprep.subr.bf16.mxu0 0
        %388 = vmatpush1.bf16.msra.mxu0 0
        %389 = vmatprep.subr.bf16.mxu0 0
        %390 = vmatpush1.bf16.msra.mxu0 0
        %391 = vmatprep.subr.bf16.mxu0 0
        %392 = vmatpush1.bf16.msra.mxu0 0
        %393 = vmatprep.subr.bf16.mxu0 0
        %394 = vmatpush1.bf16.msra.mxu0 0
        %395 = vmatprep.subr.bf16.mxu0 0
        %396 = vmatpush1.bf16.msra.mxu0 0
        %397 = vmatprep.subr.bf16.mxu0 0
        %398 = vmatpush1.bf16.msra.mxu0 0
        %399 = vmatprep.subr.bf16.mxu0 0
        %400 = vmatpush1.bf16.msra.mxu0 0
        %401 = vmatprep.mubr.bf16.mxu0 0
        %402 = vmatmul.mubr.bf16.gmra.mrb[0].mxu0 %v367
        %v403 = vpop.f32.mrb[0].mxu0
        %v404 = vadd.f32 0.0, %v403
        %v405 = vpop.f32.mrb[0].mxu0
        %v406 = vpop.f32.mrb[0].mxu0
        %v407 = vadd.f32 0.0, %v406
        %v408 = vpop.f32.mrb[0].mxu0
        %409 = vdwg.mxu0
        %v410 = vmax.f32 %v362, %v404
        %v411 = vmax.f32 %v363, %v407
        %v412 = vld [vmem:[%s172] sm:$0xff]
        %v413 = vld [vmem:[%s172 + $0xc] sm:$0xff]
        %v416 = vunpack.c.l.b16 %v412
        %v417 = vunpack.c.h.b16 %v412
        %v418 = vunpack.c.l.b16 %v413
        %v419 = vunpack.c.h.b16 %v413
        %v420 = vpack.c.b16 %v418, %v416
        %v421 = vpack.c.b16 %v419, %v417
        %422 = vrot.lane.b32.xlu0 %v420, 64
        %v423 = vpop.permute.xlu0 %422
        %424 = vrot.lane.b32.xlu0 %v421, 64
        %v425 = vpop.permute.xlu0 %424
        %vm426 = vcmask 523264
        %v427 = vsel %vm426, %v423, %v425
        %v429 = vsel %vm223, %v427, 0
        %431 = vmatprep.subr.bf16.mxu0 0
        %432 = vmatpush1.bf16.msra.mxu0 %v213
        %433 = vmatprep.subr.bf16.mxu0 0
        %434 = vmatpush1.bf16.msra.mxu0 %v214
        %435 = vmatprep.subr.bf16.mxu0 0
        %436 = vmatpush1.bf16.msra.mxu0 %v215
        %437 = vmatprep.subr.bf16.mxu0 0
        %438 = vmatpush1.bf16.msra.mxu0 %v216
        %439 = vmatprep.subr.bf16.mxu0 0
        %440 = vmatpush1.bf16.msra.mxu0 %v217
        %441 = vmatprep.subr.bf16.mxu0 0
        %442 = vmatpush1.bf16.msra.mxu0 0
        %443 = vmatprep.subr.bf16.mxu0 0
        %444 = vmatpush1.bf16.msra.mxu0 0
        %445 = vmatprep.subr.bf16.mxu0 0
        %446 = vmatpush1.bf16.msra.mxu0 0
        %447 = vmatprep.subr.bf16.mxu0 0
        %448 = vmatpush1.bf16.msra.mxu0 0
        %449 = vmatprep.subr.bf16.mxu0 0
        %450 = vmatpush1.bf16.msra.mxu0 0
        %451 = vmatprep.subr.bf16.mxu0 0
        %452 = vmatpush1.bf16.msra.mxu0 0
        %453 = vmatprep.subr.bf16.mxu0 0
        %454 = vmatpush1.bf16.msra.mxu0 0
        %455 = vmatprep.subr.bf16.mxu0 0
        %456 = vmatpush1.bf16.msra.mxu0 0
        %457 = vmatprep.subr.bf16.mxu0 0
        %458 = vmatpush1.bf16.msra.mxu0 0
        %459 = vmatprep.subr.bf16.mxu0 0
        %460 = vmatpush1.bf16.msra.mxu0 0
        %461 = vmatprep.subr.bf16.mxu0 0
        %462 = vmatpush1.bf16.msra.mxu0 0
        %463 = vmatprep.mubr.bf16.mxu0 0
        %464 = vmatmul.mubr.bf16.gmra.mrb[0].mxu0 %v429
        %v465 = vpop.f32.mrb[0].mxu0
        %v466 = vadd.f32 0.0, %v465
        %v467 = vpop.f32.mrb[0].mxu0
        %v468 = vpop.f32.mrb[0].mxu0
        %v469 = vadd.f32 0.0, %v468
        %v470 = vpop.f32.mrb[0].mxu0
        %471 = vdwg.mxu0
        %v472 = vmax.f32 %v410, %v466
        %v473 = vmax.f32 %v411, %v469
        %474 = vrot.lane.b32.xlu0 %v420, 48
        %v475 = vpop.permute.xlu0 %474
        %476 = vrot.lane.b32.xlu0 %v421, 48
        %v477 = vpop.permute.xlu0 %476
        %vm478 = vcmask 392192
        %v479 = vsel %vm478, %v475, %v477
        %v481 = vsel %vm223, %v479, 0
        %483 = vmatprep.subr.bf16.mxu0 0
        %484 = vmatpush1.bf16.msra.mxu0 %v213
        %485 = vmatprep.subr.bf16.mxu0 0
        %486 = vmatpush1.bf16.msra.mxu0 %v214
        %487 = vmatprep.subr.bf16.mxu0 0
        %488 = vmatpush1.bf16.msra.mxu0 %v215
        %489 = vmatprep.subr.bf16.mxu0 0
        %490 = vmatpush1.bf16.msra.mxu0 %v216
        %491 = vmatprep.subr.bf16.mxu0 0
        %492 = vmatpush1.bf16.msra.mxu0 %v217
        %493 = vmatprep.subr.bf16.mxu0 0
        %494 = vmatpush1.bf16.msra.mxu0 0
        %495 = vmatprep.subr.bf16.mxu0 0
        %496 = vmatpush1.bf16.msra.mxu0 0
        %497 = vmatprep.subr.bf16.mxu0 0
        %498 = vmatpush1.bf16.msra.mxu0 0
        %499 = vmatprep.subr.bf16.mxu0 0
        %500 = vmatpush1.bf16.msra.mxu0 0
        %501 = vmatprep.subr.bf16.mxu0 0
        %502 = vmatpush1.bf16.msra.mxu0 0
        %503 = vmatprep.subr.bf16.mxu0 0
        %504 = vmatpush1.bf16.msra.mxu0 0
        %505 = vmatprep.subr.bf16.mxu0 0
        %506 = vmatpush1.bf16.msra.mxu0 0
        %507 = vmatprep.subr.bf16.mxu0 0
        %508 = vmatpush1.bf16.msra.mxu0 0
        %509 = vmatprep.subr.bf16.mxu0 0
        %510 = vmatpush1.bf16.msra.mxu0 0
        %511 = vmatprep.subr.bf16.mxu0 0
        %512 = vmatpush1.bf16.msra.mxu0 0
        %513 = vmatprep.subr.bf16.mxu0 0
        %514 = vmatpush1.bf16.msra.mxu0 0
        %515 = vmatprep.mubr.bf16.mxu0 0
        %516 = vmatmul.mubr.bf16.gmra.mrb[0].mxu0 %v481
        %v517 = vpop.f32.mrb[0].mxu0
        %v518 = vadd.f32 0.0, %v517
        %v519 = vpop.f32.mrb[0].mxu0
        %v520 = vpop.f32.mrb[0].mxu0
        %v521 = vadd.f32 0.0, %v520
        %v522 = vpop.f32.mrb[0].mxu0
        %523 = vdwg.mxu0
        %v524 = vmax.f32 %v472, %v518
        %v525 = vmax.f32 %v473, %v521
        %526 = vrot.lane.b32.xlu0 %v420, 32
        %v527 = vpop.permute.xlu0 %526
        %528 = vrot.lane.b32.xlu0 %v421, 32
        %v529 = vpop.permute.xlu0 %528
        %vm530 = vcmask 261120
        %v531 = vsel %vm530, %v527, %v529
        %v533 = vsel %vm223, %v531, 0
        %535 = vmatprep.subr.bf16.mxu0 0
        %536 = vmatpush1.bf16.msra.mxu0 %v213
        %537 = vmatprep.subr.bf16.mxu0 0
        %538 = vmatpush1.bf16.msra.mxu0 %v214
        %539 = vmatprep.subr.bf16.mxu0 0
        %540 = vmatpush1.bf16.msra.mxu0 %v215
        %541 = vmatprep.subr.bf16.mxu0 0
        %542 = vmatpush1.bf16.msra.mxu0 %v216
        %543 = vmatprep.subr.bf16.mxu0 0
        %544 = vmatpush1.bf16.msra.mxu0 %v217
        %545 = vmatprep.subr.bf16.mxu0 0
        %546 = vmatpush1.bf16.msra.mxu0 0
        %547 = vmatprep.subr.bf16.mxu0 0
        %548 = vmatpush1.bf16.msra.mxu0 0
        %549 = vmatprep.subr.bf16.mxu0 0
        %550 = vmatpush1.bf16.msra.mxu0 0
        %551 = vmatprep.subr.bf16.mxu0 0
        %552 = vmatpush1.bf16.msra.mxu0 0
        %553 = vmatprep.subr.bf16.mxu0 0
        %554 = vmatpush1.bf16.msra.mxu0 0
        %555 = vmatprep.subr.bf16.mxu0 0
        %556 = vmatpush1.bf16.msra.mxu0 0
        %557 = vmatprep.subr.bf16.mxu0 0
        %558 = vmatpush1.bf16.msra.mxu0 0
        %559 = vmatprep.subr.bf16.mxu0 0
        %560 = vmatpush1.bf16.msra.mxu0 0
        %561 = vmatprep.subr.bf16.mxu0 0
        %562 = vmatpush1.bf16.msra.mxu0 0
        %563 = vmatprep.subr.bf16.mxu0 0
        %564 = vmatpush1.bf16.msra.mxu0 0
        %565 = vmatprep.subr.bf16.mxu0 0
        %566 = vmatpush1.bf16.msra.mxu0 0
        %567 = vmatprep.mubr.bf16.mxu0 0
        %568 = vmatmul.mubr.bf16.gmra.mrb[0].mxu0 %v533
        %v569 = vpop.f32.mrb[0].mxu0
        %v570 = vadd.f32 0.0, %v569
        %v571 = vpop.f32.mrb[0].mxu0
        %v572 = vpop.f32.mrb[0].mxu0
        %v573 = vadd.f32 0.0, %v572
        %v574 = vpop.f32.mrb[0].mxu0
        %575 = vdwg.mxu0
        %v576 = vmax.f32 %v524, %v570
        %v577 = vmax.f32 %v525, %v573
        %578 = vrot.lane.b32.xlu0 %v420, 16
        %v579 = vpop.permute.xlu0 %578
        %580 = vrot.lane.b32.xlu0 %v421, 16
        %v581 = vpop.permute.xlu0 %580
        %vm582 = vcmask 130048
        %v583 = vsel %vm582, %v579, %v581
        %v585 = vsel %vm223, %v583, 0
        %587 = vmatprep.subr.bf16.mxu0 0
        %588 = vmatpush1.bf16.msra.mxu0 %v213
        %589 = vmatprep.subr.bf16.mxu0 0
        %590 = vmatpush1.bf16.msra.mxu0 %v214
        %591 = vmatprep.subr.bf16.mxu0 0
        %592 = vmatpush1.bf16.msra.mxu0 %v215
        %593 = vmatprep.subr.bf16.mxu0 0
        %594 = vmatpush1.bf16.msra.mxu0 %v216
        %595 = vmatprep.subr.bf16.mxu0 0
        %596 = vmatpush1.bf16.msra.mxu0 %v217
        %597 = vmatprep.subr.bf16.mxu0 0
        %598 = vmatpush1.bf16.msra.mxu0 0
        %599 = vmatprep.subr.bf16.mxu0 0
        %600 = vmatpush1.bf16.msra.mxu0 0
        %601 = vmatprep.subr.bf16.mxu0 0
        %602 = vmatpush1.bf16.msra.mxu0 0
        %603 = vmatprep.subr.bf16.mxu0 0
        %604 = vmatpush1.bf16.msra.mxu0 0
        %605 = vmatprep.subr.bf16.mxu0 0
        %606 = vmatpush1.bf16.msra.mxu0 0
        %607 = vmatprep.subr.bf16.mxu0 0
        %608 = vmatpush1.bf16.msra.mxu0 0
        %609 = vmatprep.subr.bf16.mxu0 0
        %610 = vmatpush1.bf16.msra.mxu0 0
        %611 = vmatprep.subr.bf16.mxu0 0
        %612 = vmatpush1.bf16.msra.mxu0 0
        %613 = vmatprep.subr.bf16.mxu0 0
        %614 = vmatpush1.bf16.msra.mxu0 0
        %615 = vmatprep.subr.bf16.mxu0 0
        %616 = vmatpush1.bf16.msra.mxu0 0
        %617 = vmatprep.subr.bf16.mxu0 0
        %618 = vmatpush1.bf16.msra.mxu0 0
        %619 = vmatprep.mubr.bf16.mxu0 0
        %620 = vmatmul.mubr.bf16.gmra.mrb[0].mxu0 %v585
        %v621 = vpop.f32.mrb[0].mxu0
        %v622 = vadd.f32 0.0, %v621
        %v623 = vpop.f32.mrb[0].mxu0
        %v624 = vpop.f32.mrb[0].mxu0
        %v625 = vadd.f32 0.0, %v624
        %v626 = vpop.f32.mrb[0].mxu0
        %627 = vdwg.mxu0
        %v628 = vmax.f32 %v576, %v622
        %v629 = vmax.f32 %v577, %v625
        %v630 = vld [vmem:[%s172 + $0x4] sm:$0xf]
        %v631 = vld [vmem:[%s172 + $0x10] sm:$0xf]
        %v634 = vunpack.c.l.b16 %v630
        %v635 = vunpack.c.l.b16 %v631
        %v636 = vpack.c.b16 %v635, %v634
        %v638 = vsel %vm223, %v636, 0
        %640 = vmatprep.subr.bf16.mxu0 0
        %641 = vmatpush1.bf16.msra.mxu0 %v213
        %642 = vmatprep.subr.bf16.mxu0 0
        %643 = vmatpush1.bf16.msra.mxu0 %v214
        %644 = vmatprep.subr.bf16.mxu0 0
        %645 = vmatpush1.bf16.msra.mxu0 %v215
        %646 = vmatprep.subr.bf16.mxu0 0
        %647 = vmatpush1.bf16.msra.mxu0 %v216
        %648 = vmatprep.subr.bf16.mxu0 0
        %649 = vmatpush1.bf16.msra.mxu0 %v217
        %650 = vmatprep.subr.bf16.mxu0 0
        %651 = vmatpush1.bf16.msra.mxu0 0
        %652 = vmatprep.subr.bf16.mxu0 0
        %653 = vmatpush1.bf16.msra.mxu0 0
        %654 = vmatprep.subr.bf16.mxu0 0
        %655 = vmatpush1.bf16.msra.mxu0 0
        %656 = vmatprep.subr.bf16.mxu0 0
        %657 = vmatpush1.bf16.msra.mxu0 0
        %658 = vmatprep.subr.bf16.mxu0 0
        %659 = vmatpush1.bf16.msra.mxu0 0
        %660 = vmatprep.subr.bf16.mxu0 0
        %661 = vmatpush1.bf16.msra.mxu0 0
        %662 = vmatprep.subr.bf16.mxu0 0
        %663 = vmatpush1.bf16.msra.mxu0 0
        %664 = vmatprep.subr.bf16.mxu0 0
        %665 = vmatpush1.bf16.msra.mxu0 0
        %666 = vmatprep.subr.bf16.mxu0 0
        %667 = vmatpush1.bf16.msra.mxu0 0
        %668 = vmatprep.subr.bf16.mxu0 0
        %669 = vmatpush1.bf16.msra.mxu0 0
        %670 = vmatprep.subr.bf16.mxu0 0
        %671 = vmatpush1.bf16.msra.mxu0 0
        %672 = vmatprep.mubr.bf16.mxu0 0
        %673 = vmatmul.mubr.bf16.gmra.mrb[0].mxu0 %v638
        %v674 = vpop.f32.mrb[0].mxu0
        %v675 = vadd.f32 0.0, %v674
        %v676 = vpop.f32.mrb[0].mxu0
        %v677 = vpop.f32.mrb[0].mxu0
        %v678 = vadd.f32 0.0, %v677
        %v679 = vpop.f32.mrb[0].mxu0
        %680 = vdwg.mxu0
        %v681 = vmax.f32 %v628, %v675
        %v682 = vmax.f32 %v629, %v678
        %683 = vrot.lane.b32.xlu0 %v636, 112
        %v684 = vpop.permute.xlu0 %683
        %v686 = vsel %vm223, %v684, 0
        %688 = vmatprep.subr.bf16.mxu0 0
        %689 = vmatpush1.bf16.msra.mxu0 %v213
        %690 = vmatprep.subr.bf16.mxu0 0
        %691 = vmatpush1.bf16.msra.mxu0 %v214
        %692 = vmatprep.subr.bf16.mxu0 0
        %693 = vmatpush1.bf16.msra.mxu0 %v215
        %694 = vmatprep.subr.bf16.mxu0 0
        %695 = vmatpush1.bf16.msra.mxu0 %v216
        %696 = vmatprep.subr.bf16.mxu0 0
        %697 = vmatpush1.bf16.msra.mxu0 %v217
        %698 = vmatprep.subr.bf16.mxu0 0
        %699 = vmatpush1.bf16.msra.mxu0 0
        %700 = vmatprep.subr.bf16.mxu0 0
        %701 = vmatpush1.bf16.msra.mxu0 0
        %702 = vmatprep.subr.bf16.mxu0 0
        %703 = vmatpush1.bf16.msra.mxu0 0
        %704 = vmatprep.subr.bf16.mxu0 0
        %705 = vmatpush1.bf16.msra.mxu0 0
        %706 = vmatprep.subr.bf16.mxu0 0
        %707 = vmatpush1.bf16.msra.mxu0 0
        %708 = vmatprep.subr.bf16.mxu0 0
        %709 = vmatpush1.bf16.msra.mxu0 0
        %710 = vmatprep.subr.bf16.mxu0 0
        %711 = vmatpush1.bf16.msra.mxu0 0
        %712 = vmatprep.subr.bf16.mxu0 0
        %713 = vmatpush1.bf16.msra.mxu0 0
        %714 = vmatprep.subr.bf16.mxu0 0
        %715 = vmatpush1.bf16.msra.mxu0 0
        %716 = vmatprep.subr.bf16.mxu0 0
        %717 = vmatpush1.bf16.msra.mxu0 0
        %718 = vmatprep.subr.bf16.mxu0 0
        %719 = vmatpush1.bf16.msra.mxu0 0
        %720 = vmatprep.mubr.bf16.mxu0 0
        %721 = vmatmul.mubr.bf16.gmra.mrb[0].mxu0 %v686
        %v722 = vpop.f32.mrb[0].mxu0
        %v723 = vadd.f32 0.0, %v722
        %v724 = vpop.f32.mrb[0].mxu0
        %v725 = vpop.f32.mrb[0].mxu0
        %v726 = vadd.f32 0.0, %v725
        %v727 = vpop.f32.mrb[0].mxu0
        %728 = vdwg.mxu0
        %v729 = vmax.f32 %v681, %v723
        %v730 = vmax.f32 %v682, %v726
        %731 = vrot.lane.b32.xlu0 %v636, 96
        %v732 = vpop.permute.xlu0 %731
        %v734 = vsel %vm223, %v732, 0
        %736 = vmatprep.subr.bf16.mxu0 0
        %737 = vmatpush1.bf16.msra.mxu0 %v213
        %738 = vmatprep.subr.bf16.mxu0 0
        %739 = vmatpush1.bf16.msra.mxu0 %v214
        %740 = vmatprep.subr.bf16.mxu0 0
        %741 = vmatpush1.bf16.msra.mxu0 %v215
        %742 = vmatprep.subr.bf16.mxu0 0
        %743 = vmatpush1.bf16.msra.mxu0 %v216
        %744 = vmatprep.subr.bf16.mxu0 0
        %745 = vmatpush1.bf16.msra.mxu0 %v217
        %746 = vmatprep.subr.bf16.mxu0 0
        %747 = vmatpush1.bf16.msra.mxu0 0
        %748 = vmatprep.subr.bf16.mxu0 0
        %749 = vmatpush1.bf16.msra.mxu0 0
        %750 = vmatprep.subr.bf16.mxu0 0
        %751 = vmatpush1.bf16.msra.mxu0 0
        %752 = vmatprep.subr.bf16.mxu0 0
        %753 = vmatpush1.bf16.msra.mxu0 0
        %754 = vmatprep.subr.bf16.mxu0 0
        %755 = vmatpush1.bf16.msra.mxu0 0
        %756 = vmatprep.subr.bf16.mxu0 0
        %757 = vmatpush1.bf16.msra.mxu0 0
        %758 = vmatprep.subr.bf16.mxu0 0
        %759 = vmatpush1.bf16.msra.mxu0 0
        %760 = vmatprep.subr.bf16.mxu0 0
        %761 = vmatpush1.bf16.msra.mxu0 0
        %762 = vmatprep.subr.bf16.mxu0 0
        %763 = vmatpush1.bf16.msra.mxu0 0
        %764 = vmatprep.subr.bf16.mxu0 0
        %765 = vmatpush1.bf16.msra.mxu0 0
        %766 = vmatprep.subr.bf16.mxu0 0
        %767 = vmatpush1.bf16.msra.mxu0 0
        %768 = vmatprep.mubr.bf16.mxu0 0
        %769 = vmatmul.mubr.bf16.gmra.mrb[0].mxu0 %v734
        %v770 = vpop.f32.mrb[0].mxu0
        %v771 = vadd.f32 0.0, %v770
        %v772 = vpop.f32.mrb[0].mxu0
        %v773 = vpop.f32.mrb[0].mxu0
        %v774 = vadd.f32 0.0, %v773
        %v775 = vpop.f32.mrb[0].mxu0
        %776 = vdwg.mxu0
        %v777 = vmax.f32 %v729, %v771
        %v778 = vmax.f32 %v730, %v774
        %779 = vrot.lane.b32.xlu0 %v636, 80
        %v780 = vpop.permute.xlu0 %779
        %v782 = vsel %vm223, %v780, 0
        %784 = vmatprep.subr.bf16.mxu0 0
        %785 = vmatpush1.bf16.msra.mxu0 %v213
        %786 = vmatprep.subr.bf16.mxu0 0
        %787 = vmatpush1.bf16.msra.mxu0 %v214
        %788 = vmatprep.subr.bf16.mxu0 0
        %789 = vmatpush1.bf16.msra.mxu0 %v215
        %790 = vmatprep.subr.bf16.mxu0 0
        %791 = vmatpush1.bf16.msra.mxu0 %v216
        %792 = vmatprep.subr.bf16.mxu0 0
        %793 = vmatpush1.bf16.msra.mxu0 %v217
        %794 = vmatprep.subr.bf16.mxu0 0
        %795 = vmatpush1.bf16.msra.mxu0 0
        %796 = vmatprep.subr.bf16.mxu0 0
        %797 = vmatpush1.bf16.msra.mxu0 0
        %798 = vmatprep.subr.bf16.mxu0 0
        %799 = vmatpush1.bf16.msra.mxu0 0
        %800 = vmatprep.subr.bf16.mxu0 0
        %801 = vmatpush1.bf16.msra.mxu0 0
        %802 = vmatprep.subr.bf16.mxu0 0
        %803 = vmatpush1.bf16.msra.mxu0 0
        %804 = vmatprep.subr.bf16.mxu0 0
        %805 = vmatpush1.bf16.msra.mxu0 0
        %806 = vmatprep.subr.bf16.mxu0 0
        %807 = vmatpush1.bf16.msra.mxu0 0
        %808 = vmatprep.subr.bf16.mxu0 0
        %809 = vmatpush1.bf16.msra.mxu0 0
        %810 = vmatprep.subr.bf16.mxu0 0
        %811 = vmatpush1.bf16.msra.mxu0 0
        %812 = vmatprep.subr.bf16.mxu0 0
        %813 = vmatpush1.bf16.msra.mxu0 0
        %814 = vmatprep.subr.bf16.mxu0 0
        %815 = vmatpush1.bf16.msra.mxu0 0
        %816 = vmatprep.mubr.bf16.mxu0 0
        %817 = vmatmul.mubr.bf16.gmra.mrb[0].mxu0 %v782
        %v818 = vpop.f32.mrb[0].mxu0
        %v819 = vadd.f32 0.0, %v818
        %v820 = vpop.f32.mrb[0].mxu0
        %v821 = vpop.f32.mrb[0].mxu0
        %v822 = vadd.f32 0.0, %v821
        %v823 = vpop.f32.mrb[0].mxu0
        %824 = vdwg.mxu0
        %v825 = vmax.f32 %v777, %v819
        %v826 = vmax.f32 %v778, %v822
        %v827 = vld [vmem:[%s172 + $0x4] sm:$0xff]
        %v828 = vld [vmem:[%s172 + $0x10] sm:$0xff]
        %v831 = vunpack.c.l.b16 %v827
        %v832 = vunpack.c.h.b16 %v827
        %v833 = vunpack.c.l.b16 %v828
        %v834 = vunpack.c.h.b16 %v828
        %v835 = vpack.c.b16 %v833, %v831
        %v836 = vpack.c.b16 %v834, %v832
        %837 = vrot.lane.b32.xlu0 %v835, 64
        %v838 = vpop.permute.xlu0 %837
        %839 = vrot.lane.b32.xlu0 %v836, 64
        %v840 = vpop.permute.xlu0 %839
        %v841 = vsel %vm426, %v838, %v840
        %v843 = vsel %vm223, %v841, 0
        %845 = vmatprep.subr.bf16.mxu0 0
        %846 = vmatpush1.bf16.msra.mxu0 %v213
        %847 = vmatprep.subr.bf16.mxu0 0
        %848 = vmatpush1.bf16.msra.mxu0 %v214
        %849 = vmatprep.subr.bf16.mxu0 0
        %850 = vmatpush1.bf16.msra.mxu0 %v215
        %851 = vmatprep.subr.bf16.mxu0 0
        %852 = vmatpush1.bf16.msra.mxu0 %v216
        %853 = vmatprep.subr.bf16.mxu0 0
        %854 = vmatpush1.bf16.msra.mxu0 %v217
        %855 = vmatprep.subr.bf16.mxu0 0
        %856 = vmatpush1.bf16.msra.mxu0 0
        %857 = vmatprep.subr.bf16.mxu0 0
        %858 = vmatpush1.bf16.msra.mxu0 0
        %859 = vmatprep.subr.bf16.mxu0 0
        %860 = vmatpush1.bf16.msra.mxu0 0
        %861 = vmatprep.subr.bf16.mxu0 0
        %862 = vmatpush1.bf16.msra.mxu0 0
        %863 = vmatprep.subr.bf16.mxu0 0
        %864 = vmatpush1.bf16.msra.mxu0 0
        %865 = vmatprep.subr.bf16.mxu0 0
        %866 = vmatpush1.bf16.msra.mxu0 0
        %867 = vmatprep.subr.bf16.mxu0 0
        %868 = vmatpush1.bf16.msra.mxu0 0
        %869 = vmatprep.subr.bf16.mxu0 0
        %870 = vmatpush1.bf16.msra.mxu0 0
        %871 = vmatprep.subr.bf16.mxu0 0
        %872 = vmatpush1.bf16.msra.mxu0 0
        %873 = vmatprep.subr.bf16.mxu0 0
        %874 = vmatpush1.bf16.msra.mxu0 0
        %875 = vmatprep.subr.bf16.mxu0 0
        %876 = vmatpush1.bf16.msra.mxu0 0
        %877 = vmatprep.mubr.bf16.mxu0 0
        %878 = vmatmul.mubr.bf16.gmra.mrb[0].mxu0 %v843
        %v879 = vpop.f32.mrb[0].mxu0
        %v880 = vadd.f32 0.0, %v879
        %v881 = vpop.f32.mrb[0].mxu0
        %v882 = vpop.f32.mrb[0].mxu0
        %v883 = vadd.f32 0.0, %v882
        %v884 = vpop.f32.mrb[0].mxu0
        %885 = vdwg.mxu0
        %v886 = vmax.f32 %v825, %v880
        %v887 = vmax.f32 %v826, %v883
        %888 = vrot.lane.b32.xlu0 %v835, 48
        %v889 = vpop.permute.xlu0 %888
        %890 = vrot.lane.b32.xlu0 %v836, 48
        %v891 = vpop.permute.xlu0 %890
        %v892 = vsel %vm478, %v889, %v891
        %v894 = vsel %vm223, %v892, 0
        %896 = vmatprep.subr.bf16.mxu0 0
        %897 = vmatpush1.bf16.msra.mxu0 %v213
        %898 = vmatprep.subr.bf16.mxu0 0
        %899 = vmatpush1.bf16.msra.mxu0 %v214
        %900 = vmatprep.subr.bf16.mxu0 0
        %901 = vmatpush1.bf16.msra.mxu0 %v215
        %902 = vmatprep.subr.bf16.mxu0 0
        %903 = vmatpush1.bf16.msra.mxu0 %v216
        %904 = vmatprep.subr.bf16.mxu0 0
        %905 = vmatpush1.bf16.msra.mxu0 %v217
        %906 = vmatprep.subr.bf16.mxu0 0
        %907 = vmatpush1.bf16.msra.mxu0 0
        %908 = vmatprep.subr.bf16.mxu0 0
        %909 = vmatpush1.bf16.msra.mxu0 0
        %910 = vmatprep.subr.bf16.mxu0 0
        %911 = vmatpush1.bf16.msra.mxu0 0
        %912 = vmatprep.subr.bf16.mxu0 0
        %913 = vmatpush1.bf16.msra.mxu0 0
        %914 = vmatprep.subr.bf16.mxu0 0
        %915 = vmatpush1.bf16.msra.mxu0 0
        %916 = vmatprep.subr.bf16.mxu0 0
        %917 = vmatpush1.bf16.msra.mxu0 0
        %918 = vmatprep.subr.bf16.mxu0 0
        %919 = vmatpush1.bf16.msra.mxu0 0
        %920 = vmatprep.subr.bf16.mxu0 0
        %921 = vmatpush1.bf16.msra.mxu0 0
        %922 = vmatprep.subr.bf16.mxu0 0
        %923 = vmatpush1.bf16.msra.mxu0 0
        %924 = vmatprep.subr.bf16.mxu0 0
        %925 = vmatpush1.bf16.msra.mxu0 0
        %926 = vmatprep.subr.bf16.mxu0 0
        %927 = vmatpush1.bf16.msra.mxu0 0
        %928 = vmatprep.mubr.bf16.mxu0 0
        %929 = vmatmul.mubr.bf16.gmra.mrb[0].mxu0 %v894
        %v930 = vpop.f32.mrb[0].mxu0
        %v931 = vadd.f32 0.0, %v930
        %v932 = vpop.f32.mrb[0].mxu0
        %v933 = vpop.f32.mrb[0].mxu0
        %v934 = vadd.f32 0.0, %v933
        %v935 = vpop.f32.mrb[0].mxu0
        %936 = vdwg.mxu0
        %v937 = vmax.f32 %v886, %v931
        %v938 = vmax.f32 %v887, %v934
        %939 = vrot.lane.b32.xlu0 %v835, 32
        %v940 = vpop.permute.xlu0 %939
        %941 = vrot.lane.b32.xlu0 %v836, 32
        %v942 = vpop.permute.xlu0 %941
        %v943 = vsel %vm530, %v940, %v942
        %v945 = vsel %vm223, %v943, 0
        %947 = vmatprep.subr.bf16.mxu0 0
        %948 = vmatpush1.bf16.msra.mxu0 %v213
        %949 = vmatprep.subr.bf16.mxu0 0
        %950 = vmatpush1.bf16.msra.mxu0 %v214
        %951 = vmatprep.subr.bf16.mxu0 0
        %952 = vmatpush1.bf16.msra.mxu0 %v215
        %953 = vmatprep.subr.bf16.mxu0 0
        %954 = vmatpush1.bf16.msra.mxu0 %v216
        %955 = vmatprep.subr.bf16.mxu0 0
        %956 = vmatpush1.bf16.msra.mxu0 %v217
        %957 = vmatprep.subr.bf16.mxu0 0
        %958 = vmatpush1.bf16.msra.mxu0 0
        %959 = vmatprep.subr.bf16.mxu0 0
        %960 = vmatpush1.bf16.msra.mxu0 0
        %961 = vmatprep.subr.bf16.mxu0 0
        %962 = vmatpush1.bf16.msra.mxu0 0
        %963 = vmatprep.subr.bf16.mxu0 0
        %964 = vmatpush1.bf16.msra.mxu0 0
        %965 = vmatprep.subr.bf16.mxu0 0
        %966 = vmatpush1.bf16.msra.mxu0 0
        %967 = vmatprep.subr.bf16.mxu0 0
        %968 = vmatpush1.bf16.msra.mxu0 0
        %969 = vmatprep.subr.bf16.mxu0 0
        %970 = vmatpush1.bf16.msra.mxu0 0
        %971 = vmatprep.subr.bf16.mxu0 0
        %972 = vmatpush1.bf16.msra.mxu0 0
        %973 = vmatprep.subr.bf16.mxu0 0
        %974 = vmatpush1.bf16.msra.mxu0 0
        %975 = vmatprep.subr.bf16.mxu0 0
        %976 = vmatpush1.bf16.msra.mxu0 0
        %977 = vmatprep.subr.bf16.mxu0 0
        %978 = vmatpush1.bf16.msra.mxu0 0
        %979 = vmatprep.mubr.bf16.mxu0 0
        %980 = vmatmul.mubr.bf16.gmra.mrb[0].mxu0 %v945
        %v981 = vpop.f32.mrb[0].mxu0
        %v982 = vadd.f32 0.0, %v981
        %v983 = vpop.f32.mrb[0].mxu0
        %v984 = vpop.f32.mrb[0].mxu0
        %v985 = vadd.f32 0.0, %v984
        %v986 = vpop.f32.mrb[0].mxu0
        %987 = vdwg.mxu0
        %v988 = vmax.f32 %v937, %v982
        %v989 = vmax.f32 %v938, %v985
        %990 = vrot.lane.b32.xlu0 %v835, 16
        %v991 = vpop.permute.xlu0 %990
        %992 = vrot.lane.b32.xlu0 %v836, 16
        %v993 = vpop.permute.xlu0 %992
        %v994 = vsel %vm582, %v991, %v993
        %v996 = vsel %vm223, %v994, 0
        %998 = vmatprep.subr.bf16.mxu0 0
        %999 = vmatpush1.bf16.msra.mxu0 %v213
        %1000 = vmatprep.subr.bf16.mxu0 0
        %1001 = vmatpush1.bf16.msra.mxu0 %v214
        %1002 = vmatprep.subr.bf16.mxu0 0
        %1003 = vmatpush1.bf16.msra.mxu0 %v215
        %1004 = vmatprep.subr.bf16.mxu0 0
        %1005 = vmatpush1.bf16.msra.mxu0 %v216
        %1006 = vmatprep.subr.bf16.mxu0 0
        %1007 = vmatpush1.bf16.msra.mxu0 %v217
        %1008 = vmatprep.subr.bf16.mxu0 0
        %1009 = vmatpush1.bf16.msra.mxu0 0
        %1010 = vmatprep.subr.bf16.mxu0 0
        %1011 = vmatpush1.bf16.msra.mxu0 0
        %1012 = vmatprep.subr.bf16.mxu0 0
        %1013 = vmatpush1.bf16.msra.mxu0 0
        %1014 = vmatprep.subr.bf16.mxu0 0
        %1015 = vmatpush1.bf16.msra.mxu0 0
        %1016 = vmatprep.subr.bf16.mxu0 0
        %1017 = vmatpush1.bf16.msra.mxu0 0
        %1018 = vmatprep.subr.bf16.mxu0 0
        %1019 = vmatpush1.bf16.msra.mxu0 0
        %1020 = vmatprep.subr.bf16.mxu0 0
        %1021 = vmatpush1.bf16.msra.mxu0 0
        %1022 = vmatprep.subr.bf16.mxu0 0
        %1023 = vmatpush1.bf16.msra.mxu0 0
        %1024 = vmatprep.subr.bf16.mxu0 0
        %1025 = vmatpush1.bf16.msra.mxu0 0
        %1026 = vmatprep.subr.bf16.mxu0 0
        %1027 = vmatpush1.bf16.msra.mxu0 0
        %1028 = vmatprep.subr.bf16.mxu0 0
        %1029 = vmatpush1.bf16.msra.mxu0 0
        %1030 = vmatprep.mubr.bf16.mxu0 0
        %1031 = vmatmul.mubr.bf16.gmra.mrb[0].mxu0 %v996
        %v1032 = vpop.f32.mrb[0].mxu0
        %v1033 = vadd.f32 0.0, %v1032
        %v1034 = vpop.f32.mrb[0].mxu0
        %v1035 = vpop.f32.mrb[0].mxu0
        %v1036 = vadd.f32 0.0, %v1035
        %v1037 = vpop.f32.mrb[0].mxu0
        %1038 = vdwg.mxu0
        %v1039 = vmax.f32 %v988, %v1033
        %v1040 = vmax.f32 %v989, %v1036
        %v1041 = vld [vmem:[%s172 + $0x8] sm:$0xf]
        %v1042 = vld [vmem:[%s172 + $0x14] sm:$0xf]
        %v1045 = vunpack.c.l.b16 %v1041
        %v1046 = vunpack.c.l.b16 %v1042
        %v1047 = vpack.c.b16 %v1046, %v1045
        %v1049 = vsel %vm223, %v1047, 0
        %1051 = vmatprep.subr.bf16.mxu0 0
        %1052 = vmatpush1.bf16.msra.mxu0 %v213
        %1053 = vmatprep.subr.bf16.mxu0 0
        %1054 = vmatpush1.bf16.msra.mxu0 %v214
        %1055 = vmatprep.subr.bf16.mxu0 0
        %1056 = vmatpush1.bf16.msra.mxu0 %v215
        %1057 = vmatprep.subr.bf16.mxu0 0
        %1058 = vmatpush1.bf16.msra.mxu0 %v216
        %1059 = vmatprep.subr.bf16.mxu0 0
        %1060 = vmatpush1.bf16.msra.mxu0 %v217
        %1061 = vmatprep.subr.bf16.mxu0 0
        %1062 = vmatpush1.bf16.msra.mxu0 0
        %1063 = vmatprep.subr.bf16.mxu0 0
        %1064 = vmatpush1.bf16.msra.mxu0 0
        %1065 = vmatprep.subr.bf16.mxu0 0
        %1066 = vmatpush1.bf16.msra.mxu0 0
        %1067 = vmatprep.subr.bf16.mxu0 0
        %1068 = vmatpush1.bf16.msra.mxu0 0
        %1069 = vmatprep.subr.bf16.mxu0 0
        %1070 = vmatpush1.bf16.msra.mxu0 0
        %1071 = vmatprep.subr.bf16.mxu0 0
        %1072 = vmatpush1.bf16.msra.mxu0 0
        %1073 = vmatprep.subr.bf16.mxu0 0
        %1074 = vmatpush1.bf16.msra.mxu0 0
        %1075 = vmatprep.subr.bf16.mxu0 0
        %1076 = vmatpush1.bf16.msra.mxu0 0
        %1077 = vmatprep.subr.bf16.mxu0 0
        %1078 = vmatpush1.bf16.msra.mxu0 0
        %1079 = vmatprep.subr.bf16.mxu0 0
        %1080 = vmatpush1.bf16.msra.mxu0 0
        %1081 = vmatprep.subr.bf16.mxu0 0
        %1082 = vmatpush1.bf16.msra.mxu0 0
        %1083 = vmatprep.mubr.bf16.mxu0 0
        %1084 = vmatmul.mubr.bf16.gmra.mrb[0].mxu0 %v1049
        %v1085 = vpop.f32.mrb[0].mxu0
        %v1086 = vadd.f32 0.0, %v1085
        %v1087 = vpop.f32.mrb[0].mxu0
        %v1088 = vpop.f32.mrb[0].mxu0
        %v1089 = vadd.f32 0.0, %v1088
        %v1090 = vpop.f32.mrb[0].mxu0
        %1091 = vdwg.mxu0
        %v1092 = vmax.f32 %v1039, %v1086
        %v1093 = vmax.f32 %v1040, %v1089
        %v1094 = vld [vmem:[%s2] sm:$0x1]
        %v1096 = vlaneseq
        %v1097 = vshrl.u32 %v1096, 7
        %v1098 = vsub.s32 0, %v1097
        %v1099 = vrot.slane %v1094, %v1098
        %v1101 = vadd.f32 %v1092, %v1099
        %v1102 = vadd.f32 %v1093, %v1099
        %v1103 = vmax.f32 %v1101, 0.0
        %v1104 = vmax.f32 %v1102, 0.0
        %vm1105 = vcmask 261120
        %1106 = vst.msk [vmem:[%s166] sm:$0xff] %vm1105, %v1103
        %1107 = vst.msk [vmem:[%s166 + $0x8] sm:$0xff] %vm1105, %v1104
        %s1108 = sand.u32 %s93, 1
        %s1109 = scalar_lea.sflag [#allocation3], %s1108
        %s1110 = sand.u32 %s93, 1
        %s1111 = smul.addr %s1110, 16
        %s1112 = scalar_lea.vmem [#allocation2], %s1111
        // Predicated region
        $region33: #{tpu_custom_call.1} parent=31 // pred_check
          %p1113 = pneg %p103
        $region34: #{tpu_custom_call.1} parent=31 // pred_check_branch
          %1115 = sbr.rel (%p1113) target = $region36
        $region35: #{tpu_custom_call.1} parent=31 // pred_region
          %s1116 = smul.u32 2, %s17
          %s1118 = ssub.s32 256, 256
          %1119 = vsyncadd %s1109, %s1118
          %s1120 = smul.addr %s1116, 128
          %s1121 = scalar_lea.hbm %s3, %s1120
          %s1122 = sshll.u32 %s1112, 4
          %s1123 = int_to_ptr.vmem [resolvable:$true] %s1122
          %1128 = dma.vmem_to_hbm [thread:$0]  %s1123, 256, %s1121, %s1109, 128, 128, 8
        $region36: #{tpu_custom_call.1} parent=31 // pred_fallthru
          _
      $region32: #{tpu_custom_call.1} parent=5 // pred_fallthru
        _
      %p1129 = scmp.le.s32.totalorder 2, %s12
      // Predicated region
      $region37: #{tpu_custom_call.1} parent=5 // pred_check
        %p1130 = pneg %p1129
      $region38: #{tpu_custom_call.1} parent=5 // pred_check_branch
        %1132 = sbr.rel (%p1130) target = $region40
      $region39: #{tpu_custom_call.1} parent=5 // pred_region
        %s1133 = ssub.s32 %s12, 2
        // Predicated region
        $region41: #{tpu_custom_call.1} parent=39 // pred_check
          %p1134 = pneg %p109
        $region42: #{tpu_custom_call.1} parent=39 // pred_check_branch
          %1136 = sbr.rel (%p1134) target = $region44
        $region43: #{tpu_custom_call.1} parent=39 // pred_region
          %s1137 = sand.u32 %s94, 1
          %s1138 = scalar_lea.sflag [#allocation3], %s1137
          %s1139 = sand.u32 %s94, 1
          %s1140 = smul.addr %s1139, 16
          %s1141 = scalar_lea.vmem [#allocation2], %s1140
          %1142 = dma.done %s1138, 256
        $region44: #{tpu_custom_call.1} parent=39 // pred_fallthru
          _
      $region40: #{tpu_custom_call.1} parent=5 // pred_fallthru
        _
    $region6: #{tpu_custom_call.1} parent=1 // loop_footer
      %s16 = sadd.s32 1, %s12
    $region7: #{tpu_custom_call.1} parent=1 // loop_footer_branch
      %11 = sbr.rel target = $region3
    $region8: #{tpu_custom_call.1} parent=1 // loop_exit
      _
    %1143 = vsyncpa [#allocation3], 1
    %s1144 = scalar_lea.sflag [#allocation3], 1
    %1145 = vsyncpa %s1144, 1

</llo_original>
